<compile_context>
chip_gen: v6e
topology: v6e:2x2x1
jax: 0.10.0
libtpu: 0.0.40
codegen_flags: <defaults>
</compile_context>

<pallas_src>
import jax
import jax.numpy as jnp
from jax.experimental import pallas as pl
from jax.experimental.pallas import tpu as pltpu


def _round_up(x: int, m: int) -> int:
    return (x + m - 1) // m * m


# Cap on the batch tile: keeps the (TB, 128) f32 hidden intermediate plus the
# double-buffered x / out tiles comfortably under the default scoped-VMEM
# limit on every generation (incl. v7x's 64 MiB physical VMEM).
_MAX_TILE_B = 8192


def qnet_kernel(x_ref, w1_ref, b1_ref, w2_ref, b2_ref, o_ref):
    # fc1: (TB, S) @ (S, H_pad) -> f32 accumulate; bias + ReLU in f32.
    h = jnp.dot(x_ref[...], w1_ref[...], preferred_element_type=jnp.float32)
    h = jnp.maximum(h + b1_ref[...], 0.0)
    # fc2: (TB, H_pad) @ (H_pad, A_pad) -> f32 accumulate (bf16 MXU inputs if
    # w2 was prepared in bf16; h is cast to match).
    out = jnp.dot(h.astype(w2_ref.dtype), w2_ref[...],
                  preferred_element_type=jnp.float32)
    # Store only the true A lanes (masked vst; same store-slot count as the
    # padded store, but 32x less HBM writeback for A=4).
    a = o_ref.shape[-1]
    o_ref[...] = (out[:, :a] + b2_ref[...]).astype(o_ref.dtype)


def prepare_qnet_params(w1, b1, w2, b2, *, use_bf16=True):
    """Pad / cast parameters ONCE (e.g. after each optimizer step).

    w1: (S, H), b1: (H,), w2: (H, A), b2: (A,)  ->  kernel-ready tuple.
    w1 stays f32 (so x stays f32: no double quantization of inputs); only w2
    is optionally cast to bf16 for the larger (K=H_pad) matmul.
    """
    S, H = w1.shape
    H2, A = w2.shape
    assert H2 == H, "w1/w2 hidden dims must match"
    H_pad = _round_up(H, 128)
    A_pad = _round_up(A, 128)

    w1_p = jnp.zeros((S, H_pad), jnp.float32).at[:, :H].set(w1.astype(jnp.float32))
    b1_p = jnp.zeros((1, H_pad), jnp.float32).at[0, :H].set(b1.astype(jnp.float32))
    w2_dtype = jnp.bfloat16 if use_bf16 else jnp.float32
    w2_p = jnp.zeros((H_pad, A_pad), w2_dtype).at[:H, :A].set(w2.astype(w2_dtype))
    b2_p = b2.reshape(1, A).astype(jnp.float32)
    return (w1_p, b1_p, w2_p, b2_p)


def _num_batch_steps() -> int:
    # v7x has 2 TensorCores per chip: >=2 grid steps lets the "parallel"
    # batch axis shard across both.  Single-TC chips (v5e/v6e) prefer 1 step.
    try:
        kind = jax.devices()[0].device_kind.lower()
        if "v7" in kind:
            return 2
    except Exception:
        pass
    return 1


def _pick_tile_b(B: int, tile_b) -> int:
    if tile_b is None:
        steps = _num_batch_steps()
        tile_b = -(-B // steps) if (steps > 1 and B >= 32) else B
    tile_b = min(int(tile_b), _MAX_TILE_B)
    if tile_b >= B:
        return B                      # one full block: block dim == array dim (always legal)
    tb = _round_up(tile_b, 16)        # multiple of 16 -> sublane-legal (partial last tile masked)
    return B if tb >= B else tb


def qnet_forward(x, params, *, tile_b=None):
    """x: (B, S) f32; params from prepare_qnet_params  ->  (B, A)."""
    w1_p, b1_p, w2_p, b2_p = params
    B, S = x.shape
    assert S == w1_p.shape[0], "x feature dim must match w1"
    H_pad = w1_p.shape[1]
    A_pad = w2_p.shape[1]
    A = b2_p.shape[1]
    out_dtype = x.dtype

    TB = _pick_tile_b(B, tile_b)
    grid_b = pl.cdiv(B, TB)

    flops = 2 * B * (S * H_pad + H_pad * A_pad)
    bytes_accessed = (
        x.size * x.dtype.itemsize
        + w1_p.size * w1_p.dtype.itemsize + b1_p.size * b1_p.dtype.itemsize
        + w2_p.size * w2_p.dtype.itemsize + b2_p.size * b2_p.dtype.itemsize
        + B * A * jnp.dtype(out_dtype).itemsize
    )

    return pl.pallas_call(
        qnet_kernel,
        out_shape=jax.ShapeDtypeStruct((B, A), out_dtype),
        grid=(grid_b,),
        in_specs=[
            # x streams per batch tile (partial last tile handled by Pallas).
            pl.BlockSpec((TB, S), lambda i: (i, 0)),
            # weights / biases: constant block index -> VMEM-resident, no re-DMA.
            pl.BlockSpec((S, H_pad), lambda i: (0, 0)),
            pl.BlockSpec((1, H_pad), lambda i: (0, 0)),
            pl.BlockSpec((H_pad, A_pad), lambda i: (0, 0)),
            pl.BlockSpec((1, A), lambda i: (0, 0)),
        ],
        # Unpadded output block: last dim equals the full array dim (legal).
        out_specs=pl.BlockSpec((TB, A), lambda i: (i, 0)),
        compiler_params=pltpu.CompilerParams(
            dimension_semantics=("parallel",),
        ),
        cost_estimate=pl.CostEstimate(
            flops=flops, transcendentals=0, bytes_accessed=bytes_accessed),
    )(x, w1_p, b1_p, w2_p, b2_p)


def init_qnet_params(key, state_dim, hidden_dim, action_dim, dtype=jnp.float32):
    """Deterministic init mimicking torch.nn.Linear (U(-1/sqrt(fan_in), +1/sqrt(fan_in))).

    Weights are returned already transposed to (in, out) for the kernel.
    """
    k1, k2, k3, k4 = jax.random.split(key, 4)
    bound1 = 1.0 / jnp.sqrt(jnp.asarray(state_dim, dtype))
    bound2 = 1.0 / jnp.sqrt(jnp.asarray(hidden_dim, dtype))
    w1 = jax.random.uniform(k1, (state_dim, hidden_dim), dtype, -bound1, bound1)
    b1 = jax.random.uniform(k2, (hidden_dim,), dtype, -bound1, bound1)
    w2 = jax.random.uniform(k3, (hidden_dim, action_dim), dtype, -bound2, bound2)
    b2 = jax.random.uniform(k4, (action_dim,), dtype, -bound2, bound2)
    return w1, b1, w2, b2


if __name__ == "__main__":
    # Small shapes consistent with the module: batch=2, state_dim=8,
    # hidden_dim=32, action_dim=4.
    B, S, H, A = 2, 8, 32, 4

    key = jax.random.PRNGKey(0)
    k_x, k_p, k_xl = jax.random.split(key, 3)
    x = jax.random.normal(k_x, (B, S), dtype=jnp.float32)
    w1, b1, w2, b2 = init_qnet_params(k_p, S, H, A)

    ref = jnp.maximum(x @ w1 + b1, 0.0) @ w2 + b2

    # f32 path: tight tolerance check.
    params_f32 = prepare_qnet_params(w1, b1, w2, b2, use_bf16=False)
    out_f32 = jax.block_until_ready(qnet_forward(x, params_f32))
    assert out_f32.shape == (B, A)
    assert jnp.allclose(out_f32, ref, atol=1e-5, rtol=1e-5)

    # bf16 fc2 path (f32 x / w1 / accumulation): looser tolerance.
    params_bf16 = prepare_qnet_params(w1, b1, w2, b2, use_bf16=True)
    out_bf16 = jax.block_until_ready(qnet_forward(x, params_bf16))
    assert out_bf16.shape == (B, A)
    assert jnp.allclose(out_bf16, ref, atol=2e-2, rtol=2e-2)

    # Larger, non-multiple batch exercises the multi-step grid and the masked
    # partial final tile (no explicit batch padding of x anywhere).
    BL = 1000
    xl = jax.random.normal(k_xl, (BL, S), dtype=jnp.float32)
    refl = jnp.maximum(xl @ w1 + b1, 0.0) @ w2 + b2
    outl = jax.block_until_ready(qnet_forward(xl, params_bf16, tile_b=256))
    assert outl.shape == (BL, A)
    assert jnp.allclose(outl, refl, atol=2e-2, rtol=2e-2)

    # Default (auto-tiled) path on the larger batch as well.
    outl_auto = jax.block_until_ready(qnet_forward(xl, params_bf16))
    assert outl_auto.shape == (BL, A)
    assert jnp.allclose(outl_auto, refl, atol=2e-2, rtol=2e-2)

    print("KERNEL_OK")
</pallas_src>

<mosaic_0001>
module attributes {stable_mosaic.version = 11 : i64} {
  func.func @qnet_kernel(%arg0: i32, %arg1: memref<2x8xf32, #tpu.memory_space<vmem>>, %arg2: memref<8x128xf32, #tpu.memory_space<vmem>>, %arg3: memref<1x128xf32, #tpu.memory_space<vmem>>, %arg4: memref<128x128xf32, #tpu.memory_space<vmem>>, %arg5: memref<1x4xf32, #tpu.memory_space<vmem>>, %arg6: memref<2x4xf32, #tpu.memory_space<vmem>>) attributes {dimension_semantics = [#tpu.dimension_semantics<parallel>], iteration_bounds = array<i64: 1>, scalar_prefetch = 0 : i64, scratch_operands = 0 : i64, tpu.core_type = #tpu.core_type<tc>, window_params = [{transform_indices = @transform_0, window_bounds = array<i64: 2, 8>}, {pipeline_mode = #tpu.pipeline_mode<synchronous>, transform_indices = @transform_1, window_bounds = array<i64: 8, 128>}, {pipeline_mode = #tpu.pipeline_mode<synchronous>, transform_indices = @transform_2, window_bounds = array<i64: 1, 128>}, {pipeline_mode = #tpu.pipeline_mode<synchronous>, transform_indices = @transform_3, window_bounds = array<i64: 128, 128>}, {pipeline_mode = #tpu.pipeline_mode<synchronous>, transform_indices = @transform_4, window_bounds = array<i64: 1, 4>}, {transform_indices = @transform_5, window_bounds = array<i64: 2, 4>}]} {
    %c0 = arith.constant 0 : index
    %c0_0 = arith.constant 0 : index
    %0 = vector.load %arg1[%c0, %c0_0] : memref<2x8xf32, #tpu.memory_space<vmem>>, vector<2x8xf32>
    %c0_1 = arith.constant 0 : index
    %c0_2 = arith.constant 0 : index
    %1 = vector.load %arg2[%c0_1, %c0_2] : memref<8x128xf32, #tpu.memory_space<vmem>>, vector<8x128xf32>
    %cst = arith.constant dense<0.000000e+00> : vector<2x128xf32>
    %2 = tpu.matmul %0, %1, %cst {dimension_numbers = #tpu.dot_dimension_numbers<[1], [0], [0], [1], [0, 0, 1, 1], [], []>} : vector<2x8xf32>, vector<8x128xf32>, vector<2x128xf32> -> vector<2x128xf32>
    %c0_3 = arith.constant 0 : index
    %c0_4 = arith.constant 0 : index
    %3 = vector.load %arg3[%c0_3, %c0_4] : memref<1x128xf32, #tpu.memory_space<vmem>>, vector<1x128xf32>
    %4 = vector.broadcast %3 : vector<1x128xf32> to vector<2x128xf32>
    %5 = arith.addf %2, %4 : vector<2x128xf32>
    %cst_5 = arith.constant 0.000000e+00 : f32
    %6 = vector.broadcast %cst_5 : f32 to vector<2x128xf32>
    %7 = arith.maximumf %5, %6 : vector<2x128xf32>
    %c0_6 = arith.constant 0 : index
    %c0_7 = arith.constant 0 : index
    %8 = vector.load %arg4[%c0_6, %c0_7] : memref<128x128xf32, #tpu.memory_space<vmem>>, vector<128x128xf32>
    %cst_8 = arith.constant dense<0.000000e+00> : vector<2x128xf32>
    %9 = tpu.matmul %7, %8, %cst_8 {dimension_numbers = #tpu.dot_dimension_numbers<[1], [0], [0], [1], [0, 0, 1, 1], [], []>} : vector<2x128xf32>, vector<128x128xf32>, vector<2x128xf32> -> vector<2x128xf32>
    %10 = vector.extract_strided_slice %9 {offsets = [0, 0], sizes = [2, 4], strides = [1, 1]} : vector<2x128xf32> to vector<2x4xf32>
    %c0_9 = arith.constant 0 : index
    %c0_10 = arith.constant 0 : index
    %11 = vector.load %arg5[%c0_9, %c0_10] : memref<1x4xf32, #tpu.memory_space<vmem>>, vector<1x4xf32>
    %12 = vector.broadcast %11 : vector<1x4xf32> to vector<2x4xf32>
    %13 = arith.addf %10, %12 : vector<2x4xf32>
    %c0_11 = arith.constant 0 : index
    %c0_12 = arith.constant 0 : index
    %14 = vector.load %arg6[%c0_11, %c0_12] : memref<2x4xf32, #tpu.memory_space<vmem>>, vector<2x4xf32>
    tpu.vector_store %arg6[%c0_11, %c0_12], %13 {strides = array<i32>} : memref<2x4xf32, #tpu.memory_space<vmem>>, vector<2x4xf32>,
    return
  }
  func.func @transform_0(%arg0: i32) -> (i32, i32) {
    %c0_i32 = arith.constant 0 : i32
    %c0_i32_0 = arith.constant 0 : i32
    return %arg0, %c0_i32 : i32, i32
  }
  func.func @transform_1(%arg0: i32) -> (i32, i32) {
    %c0_i32 = arith.constant 0 : i32
    %c0_i32_0 = arith.constant 0 : i32
    %c0_i32_1 = arith.constant 0 : i32
    return %c0_i32, %c0_i32_0 : i32, i32
  }
  func.func @transform_2(%arg0: i32) -> (i32, i32) {
    %c0_i32 = arith.constant 0 : i32
    %c0_i32_0 = arith.constant 0 : i32
    %c0_i32_1 = arith.constant 0 : i32
    return %c0_i32, %c0_i32_0 : i32, i32
  }
  func.func @transform_3(%arg0: i32) -> (i32, i32) {
    %c0_i32 = arith.constant 0 : i32
    %c0_i32_0 = arith.constant 0 : i32
    %c0_i32_1 = arith.constant 0 : i32
    return %c0_i32, %c0_i32_0 : i32, i32
  }
  func.func @transform_4(%arg0: i32) -> (i32, i32) {
    %c0_i32 = arith.constant 0 : i32
    %c0_i32_0 = arith.constant 0 : i32
    %c0_i32_1 = arith.constant 0 : i32
    return %c0_i32, %c0_i32_0 : i32, i32
  }
  func.func @transform_5(%arg0: i32) -> (i32, i32) {
    %c0_i32 = arith.constant 0 : i32
    %c0_i32_0 = arith.constant 0 : i32
    return %arg0, %c0_i32 : i32, i32
  }
}

</mosaic_0001>

<llo_original>
// kernel: tpu_custom_call.1
$region0: #{tpu_custom_call.1}
  #allocation0 [shape = 'u32[]', space=smem, size = 0x4, offset = 0x4, fixed_abs, tag = 'smem constant byte address 0x4 - core index']
  #allocation1 [shape = 'u32[144,128]{1,0:T(1,128)}', space=vmem, size = 0x12000, scoped, tag = 'internal scratch']
  %s0 = inlined_call_operand.hbm [shape: f32[2,8], index: 0, kind: input, shape index: {}]
  %s1 = inlined_call_operand.hbm [shape: f32[8,128], index: 1, kind: input, shape index: {}]
  %s2 = inlined_call_operand.vmem [shape: f32[1,128], index: 2, kind: input, shape index: {}]
  %s3 = inlined_call_operand.hbm [shape: f32[128,128], index: 3, kind: input, shape index: {}]
  %s4 = inlined_call_operand.vmem [shape: f32[1,4], index: 4, kind: input, shape index: {}]
  %s5 = inlined_call_operand.hbm [shape: f32[2,4], index: 5, kind: output, shape index: {}]
  %s6 = sld [smem:[#allocation0]]
  $region42: #{tpu_custom_call.1} parent=0
    _
  %s8 = ssub.s32 1, %s6
  %s9 = scalar_select 0, %s8, %s6
  $region1: #{tpu_custom_call.1} parent=0
    #allocation2 [shape = 'u8[1024]{0}', space=vmem, size = 0x400, scoped, tag = 'input window, operand 0, single buffered']
    #allocation3 [shape = 's32[1]{0}', space=sflag, size = 0x4, scoped, tag = 'scoped memory for tpu_custom_call.1']
    #allocation4 [shape = 's32[1]{0}', space=sflag, size = 0x4, scoped, tag = 'scoped memory for tpu_custom_call.1']
    #allocation5 [shape = 'u8[4096]{0}', space=vmem, size = 0x1000, scoped, tag = 'input window, operand 1, single buffered']
    #allocation6 [shape = 's32[1]{0}', space=sflag, size = 0x4, scoped, tag = 'scoped memory for tpu_custom_call.1']
    #allocation7 [shape = 'u8[65536]{0}', space=vmem, size = 0x10000, scoped, tag = 'input window, operand 3, single buffered']
    #allocation8 [shape = 'u8[1024]{0}', space=vmem, size = 0x400, scoped, tag = 'output window, operand 0, single buffered']
    %10 = vsyncpa [#allocation3], 0
    %11 = vsyncpa [#allocation6], 0
    %12 = vsyncpa [#allocation4], 0
    // Predicated region
    $region2: #{tpu_custom_call.1} parent=1 // pred_check
      _
    $region3: #{tpu_custom_call.1} parent=1 // pred_check_branch
      %14 = sbr.rel (0) target = $region5
    $region4: #{tpu_custom_call.1} parent=1 // pred_region
      %s16 = ssub.s32 32, 32
      %17 = vsyncadd [#allocation3], %s16
      %s19 = sshll.u32 [#allocation2], 4
      %s20 = int_to_ptr.vmem [resolvable:$true] %s19
      %22 = dma.hbm_to_vmem [thread:$0]  %s0, 32, %s20, [#allocation3]
    $region5: #{tpu_custom_call.1} parent=1 // pred_fallthru
      _
    // Predicated region
    $region6: #{tpu_custom_call.1} parent=1 // pred_check
      _
    $region7: #{tpu_custom_call.1} parent=1 // pred_check_branch
      %24 = sbr.rel (0) target = $region9
    $region8: #{tpu_custom_call.1} parent=1 // pred_region
      %s26 = ssub.s32 128, 128
      %27 = vsyncadd [#allocation6], %s26
      %s29 = sshll.u32 [#allocation5], 4
      %s30 = int_to_ptr.vmem [resolvable:$true] %s29
      %32 = dma.hbm_to_vmem [thread:$0]  %s1, 128, %s30, [#allocation6]
    $region9: #{tpu_custom_call.1} parent=1 // pred_fallthru
      _
    // Predicated region
    $region10: #{tpu_custom_call.1} parent=1 // pred_check
      _
    $region11: #{tpu_custom_call.1} parent=1 // pred_check_branch
      %34 = sbr.rel (0) target = $region13
    $region12: #{tpu_custom_call.1} parent=1 // pred_region
      _
    $region13: #{tpu_custom_call.1} parent=1 // pred_fallthru
      _
    // Predicated region
    $region14: #{tpu_custom_call.1} parent=1 // pred_check
      _
    $region15: #{tpu_custom_call.1} parent=1 // pred_check_branch
      %36 = sbr.rel (0) target = $region17
    $region16: #{tpu_custom_call.1} parent=1 // pred_region
      %s38 = ssub.s32 2048, 2048
      %39 = vsyncadd [#allocation6], %s38
      %s40 = sshll.u32 [#allocation7], 4
      %s41 = int_to_ptr.vmem [resolvable:$true] %s40
      %46 = dma.hbm_to_vmem [thread:$0]  %s3, 2048, %s41, [#allocation6], 128, 128, 8
    $region17: #{tpu_custom_call.1} parent=1 // pred_fallthru
      _
    // Predicated region
    $region18: #{tpu_custom_call.1} parent=1 // pred_check
      _
    $region19: #{tpu_custom_call.1} parent=1 // pred_check_branch
      %48 = sbr.rel (0) target = $region21
    $region20: #{tpu_custom_call.1} parent=1 // pred_region
      _
    $region21: #{tpu_custom_call.1} parent=1 // pred_fallthru
      _
    // Predicated region
    $region22: #{tpu_custom_call.1} parent=1 // pred_check
      _
    $region23: #{tpu_custom_call.1} parent=1 // pred_check_branch
      %50 = sbr.rel (0) target = $region25
    $region24: #{tpu_custom_call.1} parent=1 // pred_region
      %51 = dma.done [#allocation3], 32
    $region25: #{tpu_custom_call.1} parent=1 // pred_fallthru
      _
    // Predicated region
    $region26: #{tpu_custom_call.1} parent=1 // pred_check
      _
    $region27: #{tpu_custom_call.1} parent=1 // pred_check_branch
      %53 = sbr.rel (0) target = $region29
    $region28: #{tpu_custom_call.1} parent=1 // pred_region
      %54 = dma.done [#allocation6], 128
    $region29: #{tpu_custom_call.1} parent=1 // pred_fallthru
      _
    // Predicated region
    $region30: #{tpu_custom_call.1} parent=1 // pred_check
      _
    $region31: #{tpu_custom_call.1} parent=1 // pred_check_branch
      %56 = sbr.rel (0) target = $region33
    $region32: #{tpu_custom_call.1} parent=1 // pred_region
      %57 = dma.done [#allocation6], 2048
    $region33: #{tpu_custom_call.1} parent=1 // pred_fallthru
      _
    %v58 = vld [vmem:[#allocation2] sm:$0x3]
    %v59 = vld [vmem:[#allocation5] sm:$0xff]
    %v60 = vld [vmem:[%s2] sm:$0x1]
    %v62 = vlaneseq
    %v63 = vshrl.u32 %v62, 7
    %v64 = vsub.s32 0, %v63
    %v65 = vrot.slane %v60, %v64
    %vm67 = vcmask 64512
    %v69 = vsel %vm67, %v58, 0
    %71 = vmatprep.subr.mxu0 0.0
    %72 = vmatpush1.msra.mxu0 0.0
    %73 = vmatprep.subr.mxu0 0.0
    %74 = vmatpush1.msra.mxu0 0.0
    %75 = vmatprep.subr.mxu0 0.0
    %76 = vmatpush1.msra.mxu0 0.0
    %77 = vmatprep.subr.mxu0 0.0
    %78 = vmatpush1.msra.mxu0 0.0
    %79 = vmatprep.subr.mxu0 0.0
    %80 = vmatpush1.msra.mxu0 0.0
    %81 = vmatprep.subr.mxu0 0.0
    %82 = vmatpush1.msra.mxu0 0.0
    %83 = vmatprep.subr.mxu0 0.0
    %84 = vmatpush1.msra.mxu0 0.0
    %85 = vmatprep.subr.mxu0 0.0
    %86 = vmatpush1.msra.mxu0 0.0
    %87 = vmatprep.subr.mxu0 0.0
    %88 = vmatpush1.msra.mxu0 0.0
    %89 = vmatprep.subr.mxu0 0.0
    %90 = vmatpush1.msra.mxu0 0.0
    %91 = vmatprep.subr.mxu0 0.0
    %92 = vmatpush1.msra.mxu0 0.0
    %93 = vmatprep.subr.mxu0 0.0
    %94 = vmatpush1.msra.mxu0 0.0
    %95 = vmatprep.subr.mxu0 0.0
    %96 = vmatpush1.msra.mxu0 0.0
    %97 = vmatprep.subr.mxu0 0.0
    %98 = vmatpush1.msra.mxu0 0.0
    %99 = vmatprep.subr.mxu0 0.0
    %100 = vmatpush1.msra.mxu0 0.0
    %101 = vmatprep.subr.mxu0 0.0
    %102 = vmatpush1.msra.mxu0 %v59
    %103 = vmatprep.subr.mxu0 0.0
    %104 = vmatpush2.msra.mxu0 0.0
    %105 = vmatprep.subr.mxu0 0.0
    %106 = vmatpush2.msra.mxu0 0.0
    %107 = vmatprep.subr.mxu0 0.0
    %108 = vmatpush2.msra.mxu0 0.0
    %109 = vmatprep.subr.mxu0 0.0
    %110 = vmatpush2.msra.mxu0 0.0
    %111 = vmatprep.subr.mxu0 0.0
    %112 = vmatpush2.msra.mxu0 0.0
    %113 = vmatprep.subr.mxu0 0.0
    %114 = vmatpush2.msra.mxu0 0.0
    %115 = vmatprep.subr.mxu0 0.0
    %116 = vmatpush2.msra.mxu0 0.0
    %117 = vmatprep.subr.mxu0 0.0
    %118 = vmatpush2.msra.mxu0 0.0
    %119 = vmatprep.subr.mxu0 0.0
    %120 = vmatpush2.msra.mxu0 0.0
    %121 = vmatprep.subr.mxu0 0.0
    %122 = vmatpush2.msra.mxu0 0.0
    %123 = vmatprep.subr.mxu0 0.0
    %124 = vmatpush2.msra.mxu0 0.0
    %125 = vmatprep.subr.mxu0 0.0
    %126 = vmatpush2.msra.mxu0 0.0
    %127 = vmatprep.subr.mxu0 0.0
    %128 = vmatpush2.msra.mxu0 0.0
    %129 = vmatprep.subr.mxu0 0.0
    %130 = vmatpush2.msra.mxu0 0.0
    %131 = vmatprep.subr.mxu0 0.0
    %132 = vmatpush2.msra.mxu0 0.0
    %133 = vmatprep.subr.mxu0 0.0
    %134 = vmatpush2.msra.mxu0 0.0
    %135 = vmatprep.mubr.f32.mxu0 0.0
    %136 = vmatmul.mubr.f32.gmra.mxu0 %v69
    %v137 = vpop.f32.mrf.mxu0
    %v138 = vadd.f32 %v65, %v137
    %v139 = vpop.f32.mrf.mxu0
    %140 = vdwg.mxu0
    %v141 = vmax.f32 %v138, 0.0
    %v142 = vld [vmem:[#allocation7] sm:$0xff]
    %v143 = vld [vmem:[#allocation7 + $0x8] sm:$0xff]
    %v144 = vld [vmem:[#allocation7 + $0x10] sm:$0xff]
    %v145 = vld [vmem:[#allocation7 + $0x18] sm:$0xff]
    %v146 = vld [vmem:[#allocation7 + $0x20] sm:$0xff]
    %v147 = vld [vmem:[#allocation7 + $0x28] sm:$0xff]
    %v148 = vld [vmem:[#allocation7 + $0x30] sm:$0xff]
    %v149 = vld [vmem:[#allocation7 + $0x38] sm:$0xff]
    %v150 = vld [vmem:[#allocation7 + $0x40] sm:$0xff]
    %v151 = vld [vmem:[#allocation7 + $0x48] sm:$0xff]
    %v152 = vld [vmem:[#allocation7 + $0x50] sm:$0xff]
    %v153 = vld [vmem:[#allocation7 + $0x58] sm:$0xff]
    %v154 = vld [vmem:[#allocation7 + $0x60] sm:$0xff]
    %v155 = vld [vmem:[#allocation7 + $0x68] sm:$0xff]
    %v156 = vld [vmem:[#allocation7 + $0x70] sm:$0xff]
    %v157 = vld [vmem:[#allocation7 + $0x78] sm:$0xff]
    %158 = vmatprep.subr.mxu0 0.0
    %159 = vmatpush1.msra.mxu0 %v157
    %160 = vmatprep.subr.mxu0 0.0
    %161 = vmatpush1.msra.mxu0 %v156
    %162 = vmatprep.subr.mxu0 0.0
    %163 = vmatpush1.msra.mxu0 %v155
    %164 = vmatprep.subr.mxu0 0.0
    %165 = vmatpush1.msra.mxu0 %v154
    %166 = vmatprep.subr.mxu0 0.0
    %167 = vmatpush1.msra.mxu0 %v153
    %168 = vmatprep.subr.mxu0 0.0
    %169 = vmatpush1.msra.mxu0 %v152
    %170 = vmatprep.subr.mxu0 0.0
    %171 = vmatpush1.msra.mxu0 %v151
    %172 = vmatprep.subr.mxu0 0.0
    %173 = vmatpush1.msra.mxu0 %v150
    %174 = vmatprep.subr.mxu0 0.0
    %175 = vmatpush1.msra.mxu0 %v149
    %176 = vmatprep.subr.mxu0 0.0
    %177 = vmatpush1.msra.mxu0 %v148
    %178 = vmatprep.subr.mxu0 0.0
    %179 = vmatpush1.msra.mxu0 %v147
    %180 = vmatprep.subr.mxu0 0.0
    %181 = vmatpush1.msra.mxu0 %v146
    %182 = vmatprep.subr.mxu0 0.0
    %183 = vmatpush1.msra.mxu0 %v145
    %184 = vmatprep.subr.mxu0 0.0
    %185 = vmatpush1.msra.mxu0 %v144
    %186 = vmatprep.subr.mxu0 0.0
    %187 = vmatpush1.msra.mxu0 %v143
    %188 = vmatprep.subr.mxu0 0.0
    %189 = vmatpush1.msra.mxu0 %v142
    %190 = vmatprep.subr.mxu0 0.0
    %191 = vmatpush2.msra.mxu0 0.0
    %192 = vmatprep.subr.mxu0 0.0
    %193 = vmatpush2.msra.mxu0 0.0
    %194 = vmatprep.subr.mxu0 0.0
    %195 = vmatpush2.msra.mxu0 0.0
    %196 = vmatprep.subr.mxu0 0.0
    %197 = vmatpush2.msra.mxu0 0.0
    %198 = vmatprep.subr.mxu0 0.0
    %199 = vmatpush2.msra.mxu0 0.0
    %200 = vmatprep.subr.mxu0 0.0
    %201 = vmatpush2.msra.mxu0 0.0
    %202 = vmatprep.subr.mxu0 0.0
    %203 = vmatpush2.msra.mxu0 0.0
    %204 = vmatprep.subr.mxu0 0.0
    %205 = vmatpush2.msra.mxu0 0.0
    %206 = vmatprep.subr.mxu0 0.0
    %207 = vmatpush2.msra.mxu0 0.0
    %208 = vmatprep.subr.mxu0 0.0
    %209 = vmatpush2.msra.mxu0 0.0
    %210 = vmatprep.subr.mxu0 0.0
    %211 = vmatpush2.msra.mxu0 0.0
    %212 = vmatprep.subr.mxu0 0.0
    %213 = vmatpush2.msra.mxu0 0.0
    %214 = vmatprep.subr.mxu0 0.0
    %215 = vmatpush2.msra.mxu0 0.0
    %216 = vmatprep.subr.mxu0 0.0
    %217 = vmatpush2.msra.mxu0 0.0
    %218 = vmatprep.subr.mxu0 0.0
    %219 = vmatpush2.msra.mxu0 0.0
    %220 = vmatprep.subr.mxu0 0.0
    %221 = vmatpush2.msra.mxu0 0.0
    %222 = vmatprep.mubr.f32.mxu0 0.0
    %223 = vmatmul.mubr.f32.gmra.mxu0 %v141
    %v224 = vpop.f32.mrf.mxu0
    %v225 = vadd.f32 0.0, %v224
    %v226 = vpop.f32.mrf.mxu0
    %227 = vdwg.mxu0
    %v228 = vld [vmem:[%s4] sm:$0x1]
    %v230 = vlaneseq
    %v231 = vshrl.u32 %v230, 7
    %v232 = vsub.s32 0, %v231
    %v233 = vrot.slane %v228, %v232
    %v235 = vadd.f32 %v225, %v233
    %vm236 = vcmask 25600
    %237 = vst.msk [vmem:[#allocation8] sm:$0x3] %vm236, %v235
    // Predicated region
    $region34: #{tpu_custom_call.1} parent=1 // pred_check
      _
    $region35: #{tpu_custom_call.1} parent=1 // pred_check_branch
      %239 = sbr.rel (0) target = $region37
    $region36: #{tpu_custom_call.1} parent=1 // pred_region
      %s241 = ssub.s32 32, 32
      %242 = vsyncadd [#allocation4], %s241
      %s244 = sshll.u32 [#allocation8], 4
      %s245 = int_to_ptr.vmem [resolvable:$true] %s244
      %247 = dma.vmem_to_hbm [thread:$0]  %s245, 32, %s5, [#allocation4]
    $region37: #{tpu_custom_call.1} parent=1 // pred_fallthru
      _
    // Predicated region
    $region38: #{tpu_custom_call.1} parent=1 // pred_check
      _
    $region39: #{tpu_custom_call.1} parent=1 // pred_check_branch
      %249 = sbr.rel (0) target = $region41
    $region40: #{tpu_custom_call.1} parent=1 // pred_region
      %250 = dma.done [#allocation4], 32
    $region41: #{tpu_custom_call.1} parent=1 // pred_fallthru
      _
    %251 = vsyncpa [#allocation3], 1
    %252 = vsyncpa [#allocation6], 1
    %253 = vsyncpa [#allocation4], 1

</llo_original>
